<compile_context>
chip_gen: v6e
topology: v6e:2x2x1
jax: 0.10.0
libtpu: 0.0.40
codegen_flags: <defaults>
</compile_context>

<pallas_src>
import jax
import jax.numpy as jnp
from jax import lax
from jax.experimental import pallas as pl
from jax.experimental.pallas import tpu as pltpu


def _round_up(x: int, m: int) -> int:
    return ((x + m - 1) // m) * m


def _make_kernel(rows: int, cols: int):
    """Kernel body for a fixed padded image tile of shape (rows, cols)."""

    def kernel(coord_ref, val_ref, img_ref):
        # coord_ref : (Bt, 2, n_tile) f32  rows = [row-coord, col-coord]
        # val_ref   : (Bt, 1, n_tile) f32  point values
        # img_ref   : (Bt, rows, cols) f32 accumulator, resident across N axis
        @pl.when(pl.program_id(1) == 0)
        def _init():
            img_ref[...] = jnp.zeros_like(img_ref)

        c0 = coord_ref[:, 0:1, :]          # (Bt, 1, n) row coordinates
        c1 = coord_ref[:, 1:2, :]          # (Bt, 1, n) col coordinates
        v = val_ref[...]                   # (Bt, 1, n) point values

        # ReLU-triangle bilinear weights: w(p) = max(0, 1 - |p - c|).
        # Equivalent to the PyTorch floor/ceil corner weights (integer
        # coordinates collapse to a single weight of 1), but ~3x fewer VALU
        # ops (no floor/ceil, no int casts/compares, no selects).
        pix_r = lax.broadcasted_iota(jnp.int32, (1, rows, 1), 1).astype(jnp.float32)
        pix_c = lax.broadcasted_iota(jnp.int32, (1, cols, 1), 1).astype(jnp.float32)

        row_w = v * jnp.maximum(1.0 - jnp.abs(pix_r - c0), jnp.float32(0.0))
        col_w = jnp.maximum(1.0 - jnp.abs(pix_c - c1), jnp.float32(0.0))

        # img[b, r, c] += sum_n row_w[b, r, n] * col_w[b, c, n]
        # -> batched A @ B^T on the MXU (K = n_tile on the lane axis).
        contrib = lax.dot_general(
            row_w, col_w,
            dimension_numbers=(((2,), (2,)), ((0,), (0,))),
            preferred_element_type=jnp.float32)                 # (Bt, rows, cols)
        img_ref[...] += contrib

    return kernel


def _choose_tiling(B: int, N: int, rows: int, cols: int):
    """Pick (Bt, n_tile, n_pad, n_steps) under a conservative VMEM budget."""
    # row_w/col_w temporaries are (rows + cols) * n_tile f32 per batch element;
    # keep them under ~8 MiB so even v5e's 16 MiB scoped-VMEM default is safe.
    temp_budget = 8 * 1024 * 1024
    cap = temp_budget // (4 * (rows + cols + 8))
    cap = max(128, (cap // 128) * 128)

    n_needed = max(128, _round_up(N, 128))       # lane-dense K (multiple of 128)
    n_tile = min(n_needed, 2048, cap)            # >=128, <=2048, budget-capped
    n_pad = _round_up(N, n_tile)
    n_steps = n_pad // n_tile

    # Batch Bt grid-batches per step to amortize the ~0.35us/step fixed cost.
    # per-batch bytes: double-buffered inputs + row_w/col_w + contrib + 2x acc.
    per_b = 4 * (6 * n_tile + (rows + cols) * n_tile + 3 * rows * cols)
    step_budget = 12 * 1024 * 1024
    bt = 1
    for d in range(min(B, 8), 0, -1):
        if B % d == 0 and d * per_b <= step_budget:
            bt = d
            break
    return bt, n_tile, n_pad, n_steps


def to_image_2d(values: jax.Array, coord: jax.Array, size: int) -> jax.Array:
    """Pallas equivalent of ToImage2D.forward.

    values: (B, N) float32, coord: (B, N, 2) float32 -> (B, 1, size, size) f32.
    Caller contract (mirrors the PyTorch asserts, no host sync here):
    coordinates must lie in [0, size-1] so that ceil indices stay in range.
    """
    B, N = values.shape

    # Lane-dense padded accumulator: rows to a multiple of 8 (sublanes),
    # cols to a multiple of 128 (lanes).  Sliced back to (size, size) below.
    rows = max(_round_up(size, 8), 8)
    cols = max(_round_up(size, 128), 128)

    bt, n_tile, n_pad, n_steps = _choose_tiling(B, N, rows, cols)

    # Two small inputs instead of one concatenated array (no extra HBM pass
    # over all point data in the wrapper).
    coord_t = jnp.transpose(coord.astype(jnp.float32), (0, 2, 1))   # (B, 2, N)
    vals = values.astype(jnp.float32)[:, None, :]                   # (B, 1, N)
    pad = n_pad - N
    if pad:
        coord_t = jnp.pad(coord_t, ((0, 0), (0, 0), (0, pad)))
        vals = jnp.pad(vals, ((0, 0), (0, 0), (0, pad)))            # v=0 -> no-op points

    img = pl.pallas_call(
        _make_kernel(rows, cols),
        out_shape=jax.ShapeDtypeStruct((B, rows, cols), jnp.float32),
        grid=(B // bt, n_steps),
        in_specs=[
            pl.BlockSpec((bt, 2, n_tile), lambda b, n: (b, 0, n)),
            pl.BlockSpec((bt, 1, n_tile), lambda b, n: (b, 0, n)),
        ],
        out_specs=pl.BlockSpec((bt, rows, cols), lambda b, n: (b, 0, 0)),
        compiler_params=pltpu.CompilerParams(
            dimension_semantics=("parallel", "arbitrary"),
            vmem_limit_bytes=32 * 1024 * 1024),
    )(coord_t, vals)

    # Drop the lane/sublane padding and add the channel dim (NCHW).
    return img[:, None, :size, :size]


def _reference(values, coord, size):
    """Pure-JAX reference matching the PyTorch scatter_add semantics exactly."""
    B, N = values.shape
    c0 = coord[:, :, 0]
    c1 = coord[:, :, 1]
    c0f, c0c = jnp.floor(c0), jnp.ceil(c0)
    c1f, c1c = jnp.floor(c1), jnp.ceil(c1)
    idx_ff = (c0f * size + c1f).astype(jnp.int32)
    idx_fc = (c0f * size + c1c).astype(jnp.int32)
    idx_cf = (c0c * size + c1f).astype(jnp.int32)
    idx_cc = (c0c * size + c1c).astype(jnp.int32)
    d0c = jnp.where(c0c == c0f, 1.0, jnp.abs(c0 - c0c))
    d1c = jnp.where(c1c == c1f, 1.0, jnp.abs(c1 - c1c))
    d0f = jnp.abs(c0 - c0f)
    d1f = jnp.abs(c1 - c1f)
    p_ff = d0c * d1c * values
    p_fc = d0c * d1f * values
    p_cf = d0f * d1c * values
    p_cc = d0f * d1f * values
    img = jnp.zeros((B, size * size), jnp.float32)
    b_idx = jnp.arange(B)[:, None]
    img = img.at[b_idx, idx_ff].add(p_ff)
    img = img.at[b_idx, idx_fc].add(p_fc)
    img = img.at[b_idx, idx_cf].add(p_cf)
    img = img.at[b_idx, idx_cc].add(p_cc)
    return img.reshape(B, 1, size, size)


if __name__ == "__main__":
    # ToImage2D has no learnable parameters; only `size` from __init__.
    SIZE = 16
    B, N = 2, 8

    key = jax.random.PRNGKey(0)
    k_v, k_c = jax.random.split(key)
    values = jax.random.uniform(k_v, (B, N), dtype=jnp.float32)
    # coordinates in [0, SIZE-1] so that ceil-indices stay in range
    coord = jax.random.uniform(k_c, (B, N, 2), dtype=jnp.float32) * (SIZE - 1)

    out = to_image_2d(values, coord, SIZE)
    out = jax.block_until_ready(out)

    ref = jax.block_until_ready(_reference(values, coord, SIZE))
    assert out.shape == (B, 1, SIZE, SIZE)
    assert jnp.allclose(out, ref, atol=1e-5, rtol=1e-4), "mismatch vs reference"

    print("KERNEL_OK")
</pallas_src>

<mosaic_0001>
module attributes {stable_mosaic.version = 11 : i64} {
  func.func @kernel(%arg0: i32, %arg1: i32, %arg2: memref<2x2x128xf32, #tpu.memory_space<vmem>>, %arg3: memref<2x1x128xf32, #tpu.memory_space<vmem>>, %arg4: memref<2x16x128xf32, #tpu.memory_space<vmem>>) attributes {dimension_semantics = [#tpu.dimension_semantics<parallel>, #tpu.dimension_semantics<arbitrary>], iteration_bounds = array<i64: 1, 1>, scalar_prefetch = 0 : i64, scratch_operands = 0 : i64, tpu.core_type = #tpu.core_type<tc>, window_params = [{transform_indices = @transform_0, window_bounds = array<i64: 2, 2, 128>}, {transform_indices = @transform_1, window_bounds = array<i64: 2, 1, 128>}, {transform_indices = @transform_2, window_bounds = array<i64: 2, 16, 128>}]} {
    %c0_i32 = arith.constant 0 : i32
    %0 = arith.cmpi eq, %arg1, %c0_i32 : i32
    %1 = arith.extui %0 : i1 to i32
    %c0_i32_0 = arith.constant 0 : i32
    %2 = arith.cmpi ne, %1, %c0_i32_0 : i32
    scf.if %2 {
      %cst_18 = arith.constant 0.000000e+00 : f32
      %32 = vector.broadcast %cst_18 : f32 to vector<2x16x128xf32>
      %c0_19 = arith.constant 0 : index
      %c0_20 = arith.constant 0 : index
      %c0_21 = arith.constant 0 : index
      %33 = vector.load %arg4[%c0_19, %c0_20, %c0_21] : memref<2x16x128xf32, #tpu.memory_space<vmem>>, vector<2x16x128xf32>
      tpu.vector_store %arg4[%c0_19, %c0_20, %c0_21], %32 {strides = array<i32>} : memref<2x16x128xf32, #tpu.memory_space<vmem>>, vector<2x16x128xf32>,
    } else {
    }
    %c0 = arith.constant 0 : index
    %c0_1 = arith.constant 0 : index
    %c0_2 = arith.constant 0 : index
    %3 = vector.load %arg2[%c0, %c0_1, %c0_2] : memref<2x2x128xf32, #tpu.memory_space<vmem>>, vector<2x1x128xf32>
    %c0_3 = arith.constant 0 : index
    %c1 = arith.constant 1 : index
    %c0_4 = arith.constant 0 : index
    %4 = vector.load %arg2[%c0_3, %c1, %c0_4] : memref<2x2x128xf32, #tpu.memory_space<vmem>>, vector<2x1x128xf32>
    %c0_5 = arith.constant 0 : index
    %c0_6 = arith.constant 0 : index
    %c0_7 = arith.constant 0 : index
    %5 = vector.load %arg3[%c0_5, %c0_6, %c0_7] : memref<2x1x128xf32, #tpu.memory_space<vmem>>, vector<2x1x128xf32>
    %6 = tpu.iota {dimensions = array<i32: 1>} : vector<1x16x1xi32>
    %7 = arith.sitofp %6 : vector<1x16x1xi32> to vector<1x16x1xf32>
    %8 = tpu.iota {dimensions = array<i32: 1>} : vector<1x128x1xi32>
    %9 = arith.sitofp %8 : vector<1x128x1xi32> to vector<1x128x1xf32>
    %10 = vector.broadcast %7 : vector<1x16x1xf32> to vector<2x16x128xf32>
    %11 = vector.broadcast %3 : vector<2x1x128xf32> to vector<2x16x128xf32>
    %12 = arith.subf %10, %11 : vector<2x16x128xf32>
    %13 = math.absf %12 : vector<2x16x128xf32>
    %cst = arith.constant 1.000000e+00 : f32
    %14 = vector.broadcast %cst : f32 to vector<2x16x128xf32>
    %15 = arith.subf %14, %13 : vector<2x16x128xf32>
    %cst_8 = arith.constant 0.000000e+00 : f32
    %16 = vector.broadcast %cst_8 : f32 to vector<2x16x128xf32>
    %17 = arith.maximumf %15, %16 : vector<2x16x128xf32>
    %18 = vector.broadcast %5 : vector<2x1x128xf32> to vector<2x16x128xf32>
    %19 = arith.mulf %18, %17 : vector<2x16x128xf32>
    %20 = vector.broadcast %9 : vector<1x128x1xf32> to vector<2x128x128xf32>
    %21 = vector.broadcast %4 : vector<2x1x128xf32> to vector<2x128x128xf32>
    %22 = arith.subf %20, %21 : vector<2x128x128xf32>
    %23 = math.absf %22 : vector<2x128x128xf32>
    %cst_9 = arith.constant 1.000000e+00 : f32
    %24 = vector.broadcast %cst_9 : f32 to vector<2x128x128xf32>
    %25 = arith.subf %24, %23 : vector<2x128x128xf32>
    %cst_10 = arith.constant 0.000000e+00 : f32
    %26 = vector.broadcast %cst_10 : f32 to vector<2x128x128xf32>
    %27 = arith.maximumf %25, %26 : vector<2x128x128xf32>
    %cst_11 = arith.constant dense<0.000000e+00> : vector<2x16x128xf32>
    %28 = tpu.matmul %19, %27, %cst_11 {dimension_numbers = #tpu.dot_dimension_numbers<[2], [2], [1], [1], [0, 0, 0, 1, 1, 1], [0], [0]>} : vector<2x16x128xf32>, vector<2x128x128xf32>, vector<2x16x128xf32> -> vector<2x16x128xf32>
    %c0_12 = arith.constant 0 : index
    %c0_13 = arith.constant 0 : index
    %c0_14 = arith.constant 0 : index
    %29 = vector.load %arg4[%c0_12, %c0_13, %c0_14] : memref<2x16x128xf32, #tpu.memory_space<vmem>>, vector<2x16x128xf32>
    %30 = arith.addf %29, %28 : vector<2x16x128xf32>
    %c0_15 = arith.constant 0 : index
    %c0_16 = arith.constant 0 : index
    %c0_17 = arith.constant 0 : index
    %31 = vector.load %arg4[%c0_15, %c0_16, %c0_17] : memref<2x16x128xf32, #tpu.memory_space<vmem>>, vector<2x16x128xf32>
    tpu.vector_store %arg4[%c0_15, %c0_16, %c0_17], %30 {strides = array<i32>} : memref<2x16x128xf32, #tpu.memory_space<vmem>>, vector<2x16x128xf32>,
    return
  }
  func.func @transform_0(%arg0: i32, %arg1: i32) -> (i32, i32, i32) {
    %c0_i32 = arith.constant 0 : i32
    %c0_i32_0 = arith.constant 0 : i32
    return %arg0, %c0_i32, %arg1 : i32, i32, i32
  }
  func.func @transform_1(%arg0: i32, %arg1: i32) -> (i32, i32, i32) {
    %c0_i32 = arith.constant 0 : i32
    %c0_i32_0 = arith.constant 0 : i32
    return %arg0, %c0_i32, %arg1 : i32, i32, i32
  }
  func.func @transform_2(%arg0: i32, %arg1: i32) -> (i32, i32, i32) {
    %c0_i32 = arith.constant 0 : i32
    %c0_i32_0 = arith.constant 0 : i32
    %c0_i32_1 = arith.constant 0 : i32
    return %arg0, %c0_i32, %c0_i32_0 : i32, i32, i32
  }
}

</mosaic_0001>

<llo_original>
// kernel: tpu_custom_call.1
$region0: #{tpu_custom_call.1}
  #allocation0 [shape = 'u32[]', space=smem, size = 0x4, offset = 0x4, fixed_abs, tag = 'smem constant byte address 0x4 - core index']
  #allocation1 [shape = 'u32[144,128]{1,0:T(1,128)}', space=vmem, size = 0x12000, scoped, tag = 'internal scratch']
  %s0 = inlined_call_operand.hbm [shape: f32[2,2,128], index: 0, kind: input, shape index: {}]
  %s1 = inlined_call_operand.hbm [shape: f32[2,1,128], index: 1, kind: input, shape index: {}]
  %s2 = inlined_call_operand.hbm [shape: f32[2,16,128], index: 2, kind: output, shape index: {}]
  %s3 = sld [smem:[#allocation0]]
  $region30: #{tpu_custom_call.1} parent=0
    _
  %s5 = ssub.s32 1, %s3
  %s6 = scalar_select 0, %s5, %s3
  $region1: #{tpu_custom_call.1} parent=0
    #allocation2 [shape = 'u8[2048]{0}', space=vmem, size = 0x800, scoped, tag = 'input window, operand 0, single buffered']
    #allocation3 [shape = 's32[1]{0}', space=sflag, size = 0x4, scoped, tag = 'scoped memory for tpu_custom_call.1']
    #allocation4 [shape = 's32[1]{0}', space=sflag, size = 0x4, scoped, tag = 'scoped memory for tpu_custom_call.1']
    #allocation5 [shape = 'u8[1024]{0}', space=vmem, size = 0x400, scoped, tag = 'input window, operand 1, single buffered']
    #allocation6 [shape = 's32[1]{0}', space=sflag, size = 0x4, scoped, tag = 'scoped memory for tpu_custom_call.1']
    #allocation7 [shape = 'u8[16384]{0}', space=vmem, size = 0x4000, scoped, tag = 'output window, operand 0, single buffered']
    %7 = vsyncpa [#allocation3], 0
    %8 = vsyncpa [#allocation6], 0
    %9 = vsyncpa [#allocation4], 0
    // Predicated region
    $region2: #{tpu_custom_call.1} parent=1 // pred_check
      _
    $region3: #{tpu_custom_call.1} parent=1 // pred_check_branch
      %11 = sbr.rel (0) target = $region5
    $region4: #{tpu_custom_call.1} parent=1 // pred_region
      %s13 = ssub.s32 64, 64
      %14 = vsyncadd [#allocation3], %s13
      %s15 = sshll.u32 [#allocation2], 4
      %s16 = int_to_ptr.vmem [resolvable:$true] %s15
      %21 = dma.hbm_to_vmem [thread:$0]  %s0, 64, %s16, [#allocation3], 32, 32, 2
    $region5: #{tpu_custom_call.1} parent=1 // pred_fallthru
      _
    // Predicated region
    $region6: #{tpu_custom_call.1} parent=1 // pred_check
      _
    $region7: #{tpu_custom_call.1} parent=1 // pred_check_branch
      %23 = sbr.rel (0) target = $region9
    $region8: #{tpu_custom_call.1} parent=1 // pred_region
      %s25 = ssub.s32 32, 32
      %26 = vsyncadd [#allocation6], %s25
      %s27 = sshll.u32 [#allocation5], 4
      %s28 = int_to_ptr.vmem [resolvable:$true] %s27
      %33 = dma.hbm_to_vmem [thread:$0]  %s1, 32, %s28, [#allocation6], 16, 16, 1
    $region9: #{tpu_custom_call.1} parent=1 // pred_fallthru
      _
    // Predicated region
    $region10: #{tpu_custom_call.1} parent=1 // pred_check
      _
    $region11: #{tpu_custom_call.1} parent=1 // pred_check_branch
      %35 = sbr.rel (0) target = $region13
    $region12: #{tpu_custom_call.1} parent=1 // pred_region
      %36 = dma.done [#allocation3], 64
    $region13: #{tpu_custom_call.1} parent=1 // pred_fallthru
      _
    // Predicated region
    $region14: #{tpu_custom_call.1} parent=1 // pred_check
      _
    $region15: #{tpu_custom_call.1} parent=1 // pred_check_branch
      %38 = sbr.rel (0) target = $region17
    $region16: #{tpu_custom_call.1} parent=1 // pred_region
      %39 = dma.done [#allocation6], 32
    $region17: #{tpu_custom_call.1} parent=1 // pred_fallthru
      _
    %p40 = scmp.eq.s32.totalorder 0, 0
    // Predicated region
    $region18: #{tpu_custom_call.1} parent=1 // pred_check
      %p41 = pneg %p40
    $region19: #{tpu_custom_call.1} parent=1 // pred_check_branch
      %43 = sbr.rel (%p41) target = $region21
    $region20: #{tpu_custom_call.1} parent=1 // pred_region
      %44 = vst [vmem:[#allocation7] sm:$0xff] 0.0
      %45 = vst [vmem:[#allocation7 + $0x8] sm:$0xff] 0.0
      %46 = vst [vmem:[#allocation7 + $0x10] sm:$0xff] 0.0
      %47 = vst [vmem:[#allocation7 + $0x18] sm:$0xff] 0.0
    $region21: #{tpu_custom_call.1} parent=1 // pred_fallthru
      _
    %v48 = vld [vmem:[#allocation2] sm:$0x1]
    %v49 = vld [vmem:[#allocation2 + $0x2] sm:$0x1]
    %v50 = vld [vmem:[#allocation2 + $0x1] sm:$0x1]
    %v51 = vld [vmem:[#allocation2 + $0x3] sm:$0x1]
    %v52 = vld [vmem:[#allocation5] sm:$0x1]
    %v53 = vld [vmem:[#allocation5 + $0x1] sm:$0x1]
    %v54 = vlaneseq
    %v55 = vshrl.u32 %v54, 7
    %v56 = vadd.s32 %v55, 8
    %v57 = vcvt.s32.f32 %v55
    %v58 = vcvt.s32.f32 %v56
    %v59 = vadd.s32 %v55, 16
    %v60 = vadd.s32 %v55, 24
    %v61 = vadd.s32 %v55, 32
    %v62 = vadd.s32 %v55, 40
    %v63 = vadd.s32 %v55, 48
    %v64 = vadd.s32 %v55, 56
    %v65 = vadd.s32 %v55, 64
    %v66 = vadd.s32 %v55, 72
    %v67 = vadd.s32 %v55, 80
    %v68 = vadd.s32 %v55, 88
    %v69 = vadd.s32 %v55, 96
    %v70 = vadd.s32 %v55, 104
    %v71 = vadd.s32 %v55, 112
    %v72 = vadd.s32 %v55, 120
    %v73 = vcvt.s32.f32 %v59
    %v74 = vcvt.s32.f32 %v60
    %v75 = vcvt.s32.f32 %v61
    %v76 = vcvt.s32.f32 %v62
    %v77 = vcvt.s32.f32 %v63
    %v78 = vcvt.s32.f32 %v64
    %v79 = vcvt.s32.f32 %v65
    %v80 = vcvt.s32.f32 %v66
    %v81 = vcvt.s32.f32 %v67
    %v82 = vcvt.s32.f32 %v68
    %v83 = vcvt.s32.f32 %v69
    %v84 = vcvt.s32.f32 %v70
    %v85 = vcvt.s32.f32 %v71
    %v86 = vcvt.s32.f32 %v72
    %v87 = vlaneseq
    %v88 = vshrl.u32 %v87, 7
    %v89 = vsub.s32 0, %v88
    %v90 = vrot.slane %v48, %v89
    %v91 = vlaneseq
    %v92 = vshrl.u32 %v91, 7
    %v93 = vsub.s32 0, %v92
    %v94 = vrot.slane %v49, %v93
    %v95 = vsub.f32 %v57, %v90
    %v96 = vsub.f32 %v58, %v90
    %v97 = vsub.f32 %v57, %v94
    %v98 = vsub.f32 %v58, %v94
    %v99 = vand.u32 2147483647, %v95
    %v100 = vand.u32 2147483647, %v96
    %v101 = vand.u32 2147483647, %v97
    %v102 = vand.u32 2147483647, %v98
    %v103 = vsub.f32 1.0, %v99
    %v104 = vsub.f32 1.0, %v100
    %v105 = vsub.f32 1.0, %v101
    %v106 = vsub.f32 1.0, %v102
    %v107 = vmax.f32 %v103, 0.0
    %v108 = vmax.f32 %v104, 0.0
    %v109 = vmax.f32 %v105, 0.0
    %v110 = vmax.f32 %v106, 0.0
    %v113 = vlaneseq
    %v114 = vshrl.u32 %v113, 7
    %v115 = vsub.s32 0, %v114
    %v116 = vrot.slane %v52, %v115
    %v117 = vlaneseq
    %v118 = vshrl.u32 %v117, 7
    %v119 = vsub.s32 0, %v118
    %v120 = vrot.slane %v53, %v119
    %v123 = vmul.f32 %v116, %v107
    %v124 = vmul.f32 %v116, %v108
    %v125 = vmul.f32 %v120, %v109
    %v126 = vmul.f32 %v120, %v110
    %v127 = vlaneseq
    %v128 = vshrl.u32 %v127, 7
    %v129 = vsub.s32 0, %v128
    %v130 = vrot.slane %v50, %v129
    %v131 = vlaneseq
    %v132 = vshrl.u32 %v131, 7
    %v133 = vsub.s32 0, %v132
    %v134 = vrot.slane %v51, %v133
    %v135 = vsub.f32 %v57, %v130
    %v136 = vsub.f32 %v58, %v130
    %v137 = vsub.f32 %v73, %v130
    %v138 = vsub.f32 %v74, %v130
    %v139 = vsub.f32 %v75, %v130
    %v140 = vsub.f32 %v76, %v130
    %v141 = vsub.f32 %v77, %v130
    %v142 = vsub.f32 %v78, %v130
    %v143 = vsub.f32 %v79, %v130
    %v144 = vsub.f32 %v80, %v130
    %v145 = vsub.f32 %v81, %v130
    %v146 = vsub.f32 %v82, %v130
    %v147 = vsub.f32 %v83, %v130
    %v148 = vsub.f32 %v84, %v130
    %v149 = vsub.f32 %v85, %v130
    %v150 = vsub.f32 %v86, %v130
    %v151 = vsub.f32 %v57, %v134
    %v152 = vsub.f32 %v58, %v134
    %v153 = vsub.f32 %v73, %v134
    %v154 = vsub.f32 %v74, %v134
    %v155 = vsub.f32 %v75, %v134
    %v156 = vsub.f32 %v76, %v134
    %v157 = vsub.f32 %v77, %v134
    %v158 = vsub.f32 %v78, %v134
    %v159 = vsub.f32 %v79, %v134
    %v160 = vsub.f32 %v80, %v134
    %v161 = vsub.f32 %v81, %v134
    %v162 = vsub.f32 %v82, %v134
    %v163 = vsub.f32 %v83, %v134
    %v164 = vsub.f32 %v84, %v134
    %v165 = vsub.f32 %v85, %v134
    %v166 = vsub.f32 %v86, %v134
    %v167 = vand.u32 2147483647, %v135
    %v168 = vand.u32 2147483647, %v136
    %v169 = vand.u32 2147483647, %v137
    %v170 = vand.u32 2147483647, %v138
    %v171 = vand.u32 2147483647, %v139
    %v172 = vand.u32 2147483647, %v140
    %v173 = vand.u32 2147483647, %v141
    %v174 = vand.u32 2147483647, %v142
    %v175 = vand.u32 2147483647, %v143
    %v176 = vand.u32 2147483647, %v144
    %v177 = vand.u32 2147483647, %v145
    %v178 = vand.u32 2147483647, %v146
    %v179 = vand.u32 2147483647, %v147
    %v180 = vand.u32 2147483647, %v148
    %v181 = vand.u32 2147483647, %v149
    %v182 = vand.u32 2147483647, %v150
    %v183 = vand.u32 2147483647, %v151
    %v184 = vand.u32 2147483647, %v152
    %v185 = vand.u32 2147483647, %v153
    %v186 = vand.u32 2147483647, %v154
    %v187 = vand.u32 2147483647, %v155
    %v188 = vand.u32 2147483647, %v156
    %v189 = vand.u32 2147483647, %v157
    %v190 = vand.u32 2147483647, %v158
    %v191 = vand.u32 2147483647, %v159
    %v192 = vand.u32 2147483647, %v160
    %v193 = vand.u32 2147483647, %v161
    %v194 = vand.u32 2147483647, %v162
    %v195 = vand.u32 2147483647, %v163
    %v196 = vand.u32 2147483647, %v164
    %v197 = vand.u32 2147483647, %v165
    %v198 = vand.u32 2147483647, %v166
    %v199 = vsub.f32 1.0, %v167
    %v200 = vsub.f32 1.0, %v168
    %v201 = vsub.f32 1.0, %v169
    %v202 = vsub.f32 1.0, %v170
    %v203 = vsub.f32 1.0, %v171
    %v204 = vsub.f32 1.0, %v172
    %v205 = vsub.f32 1.0, %v173
    %v206 = vsub.f32 1.0, %v174
    %v207 = vsub.f32 1.0, %v175
    %v208 = vsub.f32 1.0, %v176
    %v209 = vsub.f32 1.0, %v177
    %v210 = vsub.f32 1.0, %v178
    %v211 = vsub.f32 1.0, %v179
    %v212 = vsub.f32 1.0, %v180
    %v213 = vsub.f32 1.0, %v181
    %v214 = vsub.f32 1.0, %v182
    %v215 = vsub.f32 1.0, %v183
    %v216 = vsub.f32 1.0, %v184
    %v217 = vsub.f32 1.0, %v185
    %v218 = vsub.f32 1.0, %v186
    %v219 = vsub.f32 1.0, %v187
    %v220 = vsub.f32 1.0, %v188
    %v221 = vsub.f32 1.0, %v189
    %v222 = vsub.f32 1.0, %v190
    %v223 = vsub.f32 1.0, %v191
    %v224 = vsub.f32 1.0, %v192
    %v225 = vsub.f32 1.0, %v193
    %v226 = vsub.f32 1.0, %v194
    %v227 = vsub.f32 1.0, %v195
    %v228 = vsub.f32 1.0, %v196
    %v229 = vsub.f32 1.0, %v197
    %v230 = vsub.f32 1.0, %v198
    %v231 = vmax.f32 %v199, 0.0
    %v232 = vmax.f32 %v200, 0.0
    %v233 = vmax.f32 %v201, 0.0
    %v234 = vmax.f32 %v202, 0.0
    %v235 = vmax.f32 %v203, 0.0
    %v236 = vmax.f32 %v204, 0.0
    %v237 = vmax.f32 %v205, 0.0
    %v238 = vmax.f32 %v206, 0.0
    %v239 = vmax.f32 %v207, 0.0
    %v240 = vmax.f32 %v208, 0.0
    %v241 = vmax.f32 %v209, 0.0
    %v242 = vmax.f32 %v210, 0.0
    %v243 = vmax.f32 %v211, 0.0
    %v244 = vmax.f32 %v212, 0.0
    %v245 = vmax.f32 %v213, 0.0
    %v246 = vmax.f32 %v214, 0.0
    %v247 = vmax.f32 %v215, 0.0
    %v248 = vmax.f32 %v216, 0.0
    %v249 = vmax.f32 %v217, 0.0
    %v250 = vmax.f32 %v218, 0.0
    %v251 = vmax.f32 %v219, 0.0
    %v252 = vmax.f32 %v220, 0.0
    %v253 = vmax.f32 %v221, 0.0
    %v254 = vmax.f32 %v222, 0.0
    %v255 = vmax.f32 %v223, 0.0
    %v256 = vmax.f32 %v224, 0.0
    %v257 = vmax.f32 %v225, 0.0
    %v258 = vmax.f32 %v226, 0.0
    %v259 = vmax.f32 %v227, 0.0
    %v260 = vmax.f32 %v228, 0.0
    %v261 = vmax.f32 %v229, 0.0
    %v262 = vmax.f32 %v230, 0.0
    %263 = vmatprep.subr.mxu0 0.0
    %264 = vmatpush1.xpose.msra.mxu0 %v246
    %265 = vmatprep.subr.mxu0 0.0
    %266 = vmatpush1.xpose.msra.mxu0 %v245
    %267 = vmatprep.subr.mxu0 0.0
    %268 = vmatpush1.xpose.msra.mxu0 %v244
    %269 = vmatprep.subr.mxu0 0.0
    %270 = vmatpush1.xpose.msra.mxu0 %v243
    %271 = vmatprep.subr.mxu0 0.0
    %272 = vmatpush1.xpose.msra.mxu0 %v242
    %273 = vmatprep.subr.mxu0 0.0
    %274 = vmatpush1.xpose.msra.mxu0 %v241
    %275 = vmatprep.subr.mxu0 0.0
    %276 = vmatpush1.xpose.msra.mxu0 %v240
    %277 = vmatprep.subr.mxu0 0.0
    %278 = vmatpush1.xpose.msra.mxu0 %v239
    %279 = vmatprep.subr.mxu0 0.0
    %280 = vmatpush1.xpose.msra.mxu0 %v238
    %281 = vmatprep.subr.mxu0 0.0
    %282 = vmatpush1.xpose.msra.mxu0 %v237
    %283 = vmatprep.subr.mxu0 0.0
    %284 = vmatpush1.xpose.msra.mxu0 %v236
    %285 = vmatprep.subr.mxu0 0.0
    %286 = vmatpush1.xpose.msra.mxu0 %v235
    %287 = vmatprep.subr.mxu0 0.0
    %288 = vmatpush1.xpose.msra.mxu0 %v234
    %289 = vmatprep.subr.mxu0 0.0
    %290 = vmatpush1.xpose.msra.mxu0 %v233
    %291 = vmatprep.subr.mxu0 0.0
    %292 = vmatpush1.xpose.msra.mxu0 %v232
    %293 = vmatprep.subr.mxu0 0.0
    %294 = vmatpush1.xpose.msra.mxu0 %v231
    %295 = vmatprep.subr.mxu0 0.0
    %296 = vmatpush2.xpose.msra.mxu0 0.0
    %297 = vmatprep.subr.mxu0 0.0
    %298 = vmatpush2.xpose.msra.mxu0 0.0
    %299 = vmatprep.subr.mxu0 0.0
    %300 = vmatpush2.xpose.msra.mxu0 0.0
    %301 = vmatprep.subr.mxu0 0.0
    %302 = vmatpush2.xpose.msra.mxu0 0.0
    %303 = vmatprep.subr.mxu0 0.0
    %304 = vmatpush2.xpose.msra.mxu0 0.0
    %305 = vmatprep.subr.mxu0 0.0
    %306 = vmatpush2.xpose.msra.mxu0 0.0
    %307 = vmatprep.subr.mxu0 0.0
    %308 = vmatpush2.xpose.msra.mxu0 0.0
    %309 = vmatprep.subr.mxu0 0.0
    %310 = vmatpush2.xpose.msra.mxu0 0.0
    %311 = vmatprep.subr.mxu0 0.0
    %312 = vmatpush2.xpose.msra.mxu0 0.0
    %313 = vmatprep.subr.mxu0 0.0
    %314 = vmatpush2.xpose.msra.mxu0 0.0
    %315 = vmatprep.subr.mxu0 0.0
    %316 = vmatpush2.xpose.msra.mxu0 0.0
    %317 = vmatprep.subr.mxu0 0.0
    %318 = vmatpush2.xpose.msra.mxu0 0.0
    %319 = vmatprep.subr.mxu0 0.0
    %320 = vmatpush2.xpose.msra.mxu0 0.0
    %321 = vmatprep.subr.mxu0 0.0
    %322 = vmatpush2.xpose.msra.mxu0 0.0
    %323 = vmatprep.subr.mxu0 0.0
    %324 = vmatpush2.xpose.msra.mxu0 0.0
    %325 = vmatprep.subr.mxu0 0.0
    %326 = vmatpush2.xpose.msra.mxu0 0.0
    %327 = vmatprep.mubr.f32.mxu0 0.0
    %328 = vmatmul.mubr.f32.gmra.mxu0 %v123
    %v329 = vpop.f32.mrf.mxu0
    %v330 = vadd.f32 0.0, %v329
    %v331 = vpop.f32.mrf.mxu0
    %332 = vmatprep.mubr.f32.mxu0 0.0
    %333 = vmatmul.mubr.f32.gmra.mxu0 %v124
    %v334 = vpop.f32.mrf.mxu0
    %v335 = vadd.f32 0.0, %v334
    %v336 = vpop.f32.mrf.mxu0
    %337 = vdwg.mxu0
    %338 = vmatprep.subr.mxu0 0.0
    %339 = vmatpush1.xpose.msra.mxu0 %v262
    %340 = vmatprep.subr.mxu0 0.0
    %341 = vmatpush1.xpose.msra.mxu0 %v261
    %342 = vmatprep.subr.mxu0 0.0
    %343 = vmatpush1.xpose.msra.mxu0 %v260
    %344 = vmatprep.subr.mxu0 0.0
    %345 = vmatpush1.xpose.msra.mxu0 %v259
    %346 = vmatprep.subr.mxu0 0.0
    %347 = vmatpush1.xpose.msra.mxu0 %v258
    %348 = vmatprep.subr.mxu0 0.0
    %349 = vmatpush1.xpose.msra.mxu0 %v257
    %350 = vmatprep.subr.mxu0 0.0
    %351 = vmatpush1.xpose.msra.mxu0 %v256
    %352 = vmatprep.subr.mxu0 0.0
    %353 = vmatpush1.xpose.msra.mxu0 %v255
    %354 = vmatprep.subr.mxu0 0.0
    %355 = vmatpush1.xpose.msra.mxu0 %v254
    %356 = vmatprep.subr.mxu0 0.0
    %357 = vmatpush1.xpose.msra.mxu0 %v253
    %358 = vmatprep.subr.mxu0 0.0
    %359 = vmatpush1.xpose.msra.mxu0 %v252
    %360 = vmatprep.subr.mxu0 0.0
    %361 = vmatpush1.xpose.msra.mxu0 %v251
    %362 = vmatprep.subr.mxu0 0.0
    %363 = vmatpush1.xpose.msra.mxu0 %v250
    %364 = vmatprep.subr.mxu0 0.0
    %365 = vmatpush1.xpose.msra.mxu0 %v249
    %366 = vmatprep.subr.mxu0 0.0
    %367 = vmatpush1.xpose.msra.mxu0 %v248
    %368 = vmatprep.subr.mxu0 0.0
    %369 = vmatpush1.xpose.msra.mxu0 %v247
    %370 = vmatprep.subr.mxu0 0.0
    %371 = vmatpush2.xpose.msra.mxu0 0.0
    %372 = vmatprep.subr.mxu0 0.0
    %373 = vmatpush2.xpose.msra.mxu0 0.0
    %374 = vmatprep.subr.mxu0 0.0
    %375 = vmatpush2.xpose.msra.mxu0 0.0
    %376 = vmatprep.subr.mxu0 0.0
    %377 = vmatpush2.xpose.msra.mxu0 0.0
    %378 = vmatprep.subr.mxu0 0.0
    %379 = vmatpush2.xpose.msra.mxu0 0.0
    %380 = vmatprep.subr.mxu0 0.0
    %381 = vmatpush2.xpose.msra.mxu0 0.0
    %382 = vmatprep.subr.mxu0 0.0
    %383 = vmatpush2.xpose.msra.mxu0 0.0
    %384 = vmatprep.subr.mxu0 0.0
    %385 = vmatpush2.xpose.msra.mxu0 0.0
    %386 = vmatprep.subr.mxu0 0.0
    %387 = vmatpush2.xpose.msra.mxu0 0.0
    %388 = vmatprep.subr.mxu0 0.0
    %389 = vmatpush2.xpose.msra.mxu0 0.0
    %390 = vmatprep.subr.mxu0 0.0
    %391 = vmatpush2.xpose.msra.mxu0 0.0
    %392 = vmatprep.subr.mxu0 0.0
    %393 = vmatpush2.xpose.msra.mxu0 0.0
    %394 = vmatprep.subr.mxu0 0.0
    %395 = vmatpush2.xpose.msra.mxu0 0.0
    %396 = vmatprep.subr.mxu0 0.0
    %397 = vmatpush2.xpose.msra.mxu0 0.0
    %398 = vmatprep.subr.mxu0 0.0
    %399 = vmatpush2.xpose.msra.mxu0 0.0
    %400 = vmatprep.subr.mxu0 0.0
    %401 = vmatpush2.xpose.msra.mxu0 0.0
    %402 = vmatprep.mubr.f32.mxu0 0.0
    %403 = vmatmul.mubr.f32.gmra.mxu0 %v125
    %v404 = vpop.f32.mrf.mxu0
    %v405 = vadd.f32 0.0, %v404
    %v406 = vpop.f32.mrf.mxu0
    %407 = vmatprep.mubr.f32.mxu0 0.0
    %408 = vmatmul.mubr.f32.gmra.mxu0 %v126
    %v409 = vpop.f32.mrf.mxu0
    %v410 = vadd.f32 0.0, %v409
    %v411 = vpop.f32.mrf.mxu0
    %412 = vdwg.mxu0
    %v413 = vld [vmem:[#allocation7] sm:$0xff]
    %v414 = vld [vmem:[#allocation7 + $0x8] sm:$0xff]
    %v415 = vld [vmem:[#allocation7 + $0x10] sm:$0xff]
    %v416 = vld [vmem:[#allocation7 + $0x18] sm:$0xff]
    %v417 = vadd.f32 %v413, %v330
    %v418 = vadd.f32 %v414, %v335
    %v419 = vadd.f32 %v415, %v405
    %v420 = vadd.f32 %v416, %v410
    %421 = vst [vmem:[#allocation7] sm:$0xff] %v417
    %422 = vst [vmem:[#allocation7 + $0x8] sm:$0xff] %v418
    %423 = vst [vmem:[#allocation7 + $0x10] sm:$0xff] %v419
    %424 = vst [vmem:[#allocation7 + $0x18] sm:$0xff] %v420
    // Predicated region
    $region22: #{tpu_custom_call.1} parent=1 // pred_check
      _
    $region23: #{tpu_custom_call.1} parent=1 // pred_check_branch
      %426 = sbr.rel (0) target = $region25
    $region24: #{tpu_custom_call.1} parent=1 // pred_region
      %s428 = ssub.s32 512, 512
      %429 = vsyncadd [#allocation4], %s428
      %s430 = sshll.u32 [#allocation7], 4
      %s431 = int_to_ptr.vmem [resolvable:$true] %s430
      %436 = dma.vmem_to_hbm [thread:$0]  %s431, 512, %s2, [#allocation4], 128, 128, 8
    $region25: #{tpu_custom_call.1} parent=1 // pred_fallthru
      _
    // Predicated region
    $region26: #{tpu_custom_call.1} parent=1 // pred_check
      _
    $region27: #{tpu_custom_call.1} parent=1 // pred_check_branch
      %438 = sbr.rel (0) target = $region29
    $region28: #{tpu_custom_call.1} parent=1 // pred_region
      %439 = dma.done [#allocation4], 512
    $region29: #{tpu_custom_call.1} parent=1 // pred_fallthru
      _
    %440 = vsyncpa [#allocation3], 1
    %441 = vsyncpa [#allocation6], 1
    %442 = vsyncpa [#allocation4], 1

</llo_original>
